<compile_context>
chip_gen: v7x
topology: tpu7x:2x2x1
jax: 0.10.0
libtpu: 0.0.40
codegen_flags: <defaults>
</compile_context>

<pallas_src>
import functools
import math

import jax
import jax.numpy as jnp
from jax.experimental import pallas as pl
from jax.experimental.pallas import tpu as pltpu


_VMEM_LIMIT = 32 * 1024 * 1024  # safe on v5e/v6e/v7x (<= physical, >= v5e default)


def _const_spec(shape):
    return pl.BlockSpec(shape, lambda i: (0,) * len(shape))


def _ln(x, g, b, eps=1e-5):
    m = jnp.mean(x, axis=-1, keepdims=True)
    v = jnp.mean((x - m) ** 2, axis=-1, keepdims=True)
    return (x - m) * jax.lax.rsqrt(v + eps) * g + b


# ----------------------------------------------------------------------------
# 1. box_encoding MLP kernel
# ----------------------------------------------------------------------------

def _box_mlp_kernel(x_ref, w1_ref, b1_ref, s1_ref, t1_ref,
                    w2_ref, b2_ref, s2_ref, t2_ref,
                    w3_ref, b3_ref, o_ref):
    """Fused MLP([4, d//4, d, d]) = Conv1d(k=1)+BN(eval)+ReLU x2 + Conv1d(k=1)."""
    x = x_ref[...]
    h = jnp.dot(x, w1_ref[...], preferred_element_type=jnp.float32) + b1_ref[...]
    h = jnp.maximum(h * s1_ref[...] + t1_ref[...], 0.0)        # BN (eval) + ReLU
    h = jnp.dot(h, w2_ref[...], preferred_element_type=jnp.float32) + b2_ref[...]
    h = jnp.maximum(h * s2_ref[...] + t2_ref[...], 0.0)        # BN (eval) + ReLU
    o_ref[...] = jnp.dot(h, w3_ref[...], preferred_element_type=jnp.float32) + b3_ref[...]


def box_encoding_apply(p, x_rows):
    """x_rows: (N, 4) channels-last rows. Returns (N, d_model)."""
    n = x_rows.shape[0]
    # Large M tile (single step when N is small) to amortize per-step overhead.
    tm = min(512, ((n + 7) // 8) * 8)
    n_pad = ((n + tm - 1) // tm) * tm
    if n_pad != n:
        x_rows = jnp.pad(x_rows, ((0, n_pad - n), (0, 0)))
    d4 = p["box_w1"].shape[1]
    d = p["box_w3"].shape[1]
    eps = 1e-5
    # fold eval-mode BatchNorm into per-channel scale / shift
    s1 = p["bn1_g"] / jnp.sqrt(p["bn1_v"] + eps)
    t1 = p["bn1_b"] - p["bn1_m"] * s1
    s2 = p["bn2_g"] / jnp.sqrt(p["bn2_v"] + eps)
    t2 = p["bn2_b"] - p["bn2_m"] * s2

    out = pl.pallas_call(
        _box_mlp_kernel,
        out_shape=jax.ShapeDtypeStruct((n_pad, d), jnp.float32),
        grid=(n_pad // tm,),
        in_specs=[
            pl.BlockSpec((tm, 4), lambda i: (i, 0)),
            _const_spec((4, d4)), _const_spec((1, d4)),
            _const_spec((1, d4)), _const_spec((1, d4)),
            _const_spec((d4, d)), _const_spec((1, d)),
            _const_spec((1, d)), _const_spec((1, d)),
            _const_spec((d, d)), _const_spec((1, d)),
        ],
        out_specs=pl.BlockSpec((tm, d), lambda i: (i, 0)),
        compiler_params=pltpu.CompilerParams(
            dimension_semantics=("parallel",),
            vmem_limit_bytes=_VMEM_LIMIT),
    )(x_rows,
      p["box_w1"], p["box_b1"].reshape(1, -1), s1.reshape(1, -1), t1.reshape(1, -1),
      p["box_w2"], p["box_b2"].reshape(1, -1), s2.reshape(1, -1), t2.reshape(1, -1),
      p["box_w3"], p["box_b3"].reshape(1, -1))
    return out[:n]


# ----------------------------------------------------------------------------
# 2. sequence assembly kernel (train + test parts into one buffer, no concat)
# ----------------------------------------------------------------------------

def _assemble_kernel(trf_ref, lbl_ref, ltrb_ref, tef_ref, fg_ref, tt_ref, o_ref):
    s_tr = trf_ref.shape[1]
    o_ref[0, :s_tr, :] = trf_ref[0] + fg_ref[0] * lbl_ref[0] + ltrb_ref[0]
    o_ref[0, s_tr:, :] = tef_ref[0] + tt_ref[0]


def assemble_sequences(train_feat_seq, train_label_seq, ltrb_enc,
                       test_feat_seq, fg_token, test_token):
    """All sequence args are batch-major (B, S, D) / (B, S, 1)."""
    b, s_tr, d = train_feat_seq.shape
    s_te = test_feat_seq.shape[1]
    return pl.pallas_call(
        _assemble_kernel,
        out_shape=jax.ShapeDtypeStruct((b, s_tr + s_te, d), jnp.float32),
        grid=(b,),
        in_specs=[pl.BlockSpec((1, s_tr, d), lambda i: (i, 0, 0)),
                  pl.BlockSpec((1, s_tr, 1), lambda i: (i, 0, 0)),
                  pl.BlockSpec((1, s_tr, d), lambda i: (i, 0, 0)),
                  pl.BlockSpec((1, s_te, d), lambda i: (i, 0, 0)),
                  _const_spec((1, 1, d)),
                  _const_spec((1, 1, d))],
        out_specs=pl.BlockSpec((1, s_tr + s_te, d), lambda i: (i, 0, 0)),
        compiler_params=pltpu.CompilerParams(
            dimension_semantics=("parallel",),
            vmem_limit_bytes=_VMEM_LIMIT),
    )(train_feat_seq, train_label_seq, ltrb_enc, test_feat_seq, fg_token, test_token)


# ----------------------------------------------------------------------------
# 3./4. Transformer stand-in (external dependency of FilterPredictor)
# ----------------------------------------------------------------------------
# TODO(synk): the real ToMP transformer is an external multi-head module passed
# into FilterPredictor.__init__; it is replaced here by a minimal deterministic
# single-head encoder/decoder layer pair with the same DETR-style role.

def _encoder_layer_kernel(x_ref, wqkv_ref, bqkv_ref, wo_ref, bo_ref,
                          ln1g_ref, ln1b_ref, w1_ref, b1_ref, w2_ref, b2_ref,
                          ln2g_ref, ln2b_ref, o_ref, *, scale):
    x = x_ref[0]                                                    # (S, D)
    # fused Q/K/V projections (single x load, stacked weights)
    q = jnp.dot(x, wqkv_ref[0], preferred_element_type=jnp.float32) + bqkv_ref[0]
    k = jnp.dot(x, wqkv_ref[1], preferred_element_type=jnp.float32) + bqkv_ref[1]
    v = jnp.dot(x, wqkv_ref[2], preferred_element_type=jnp.float32) + bqkv_ref[2]
    q = q * scale                                                   # scale q once
    s = jax.lax.dot_general(q, k, (((1,), (1,)), ((), ())),
                            preferred_element_type=jnp.float32)     # (S, S)
    s = s - jnp.max(s, axis=-1, keepdims=True)
    pr = jnp.exp(s)
    pr = pr * pl.reciprocal(jnp.sum(pr, axis=-1, keepdims=True), approx=True)
    attn = jnp.dot(pr, v, preferred_element_type=jnp.float32)
    attn = jnp.dot(attn, wo_ref[...], preferred_element_type=jnp.float32) + bo_ref[...]
    h = _ln(x + attn, ln1g_ref[...], ln1b_ref[...])
    ff = jnp.maximum(jnp.dot(h, w1_ref[...], preferred_element_type=jnp.float32)
                     + b1_ref[...], 0.0)
    ff = jnp.dot(ff, w2_ref[...], preferred_element_type=jnp.float32) + b2_ref[...]
    o_ref[0] = _ln(h + ff, ln2g_ref[...], ln2b_ref[...])


def _decoder_layer_kernel(mem_ref, qe_ref, wq_ref, bq_ref, wkv_ref, bkv_ref,
                          wo_ref, bo_ref, ln1g_ref, ln1b_ref, w1_ref, b1_ref,
                          w2_ref, b2_ref, ln2g_ref, ln2b_ref, o_ref, *, scale):
    mem = mem_ref[0]                                                # (S, D)
    tgt = qe_ref[...]                                               # (1, D)
    q = (jnp.dot(tgt, wq_ref[...], preferred_element_type=jnp.float32)
         + bq_ref[...]) * scale
    k = jnp.dot(mem, wkv_ref[0], preferred_element_type=jnp.float32) + bkv_ref[0]
    v = jnp.dot(mem, wkv_ref[1], preferred_element_type=jnp.float32) + bkv_ref[1]
    s = jax.lax.dot_general(q, k, (((1,), (1,)), ((), ())),
                            preferred_element_type=jnp.float32)     # (1, S)
    s = s - jnp.max(s, axis=-1, keepdims=True)
    pr = jnp.exp(s)
    pr = pr * pl.reciprocal(jnp.sum(pr, axis=-1, keepdims=True), approx=True)
    attn = jnp.dot(pr, v, preferred_element_type=jnp.float32)       # (1, D)
    attn = jnp.dot(attn, wo_ref[...], preferred_element_type=jnp.float32) + bo_ref[...]
    y = _ln(tgt + attn, ln1g_ref[...], ln1b_ref[...])
    ff = jnp.maximum(jnp.dot(y, w1_ref[...], preferred_element_type=jnp.float32)
                     + b1_ref[...], 0.0)
    ff = jnp.dot(ff, w2_ref[...], preferred_element_type=jnp.float32) + b2_ref[...]
    o_ref[0] = _ln(y + ff, ln2g_ref[...], ln2b_ref[...])


def transformer_apply(p, src, query_embed):
    """src: (B, S, D) batch-major. Returns (hs (B,1,D), memory (B,S,D))."""
    b, s, d = src.shape
    dff = p["enc_w1"].shape[1]
    scale = 1.0 / math.sqrt(d)

    memory = pl.pallas_call(
        functools.partial(_encoder_layer_kernel, scale=scale),
        out_shape=jax.ShapeDtypeStruct((b, s, d), jnp.float32),
        grid=(b,),
        in_specs=[pl.BlockSpec((1, s, d), lambda i: (i, 0, 0)),
                  _const_spec((3, d, d)), _const_spec((3, 1, d)),
                  _const_spec((d, d)), _const_spec((1, d)),
                  _const_spec((1, d)), _const_spec((1, d)),
                  _const_spec((d, dff)), _const_spec((1, dff)),
                  _const_spec((dff, d)), _const_spec((1, d)),
                  _const_spec((1, d)), _const_spec((1, d))],
        out_specs=pl.BlockSpec((1, s, d), lambda i: (i, 0, 0)),
        compiler_params=pltpu.CompilerParams(
            dimension_semantics=("parallel",),
            vmem_limit_bytes=_VMEM_LIMIT),
    )(src, p["enc_wqkv"], p["enc_bqkv"], p["enc_wo"], p["enc_bo"].reshape(1, -1),
      p["enc_ln1_g"].reshape(1, -1), p["enc_ln1_b"].reshape(1, -1),
      p["enc_w1"], p["enc_b1"].reshape(1, -1),
      p["enc_w2"], p["enc_b2"].reshape(1, -1),
      p["enc_ln2_g"].reshape(1, -1), p["enc_ln2_b"].reshape(1, -1))

    hs = pl.pallas_call(
        functools.partial(_decoder_layer_kernel, scale=scale),
        out_shape=jax.ShapeDtypeStruct((b, 1, d), jnp.float32),
        grid=(b,),
        in_specs=[pl.BlockSpec((1, s, d), lambda i: (i, 0, 0)),
                  _const_spec((1, d)),
                  _const_spec((d, d)), _const_spec((1, d)),
                  _const_spec((2, d, d)), _const_spec((2, 1, d)),
                  _const_spec((d, d)), _const_spec((1, d)),
                  _const_spec((1, d)), _const_spec((1, d)),
                  _const_spec((d, dff)), _const_spec((1, dff)),
                  _const_spec((dff, d)), _const_spec((1, d)),
                  _const_spec((1, d)), _const_spec((1, d))],
        out_specs=pl.BlockSpec((1, 1, d), lambda i: (i, 0, 0)),
        compiler_params=pltpu.CompilerParams(
            dimension_semantics=("parallel",),
            vmem_limit_bytes=_VMEM_LIMIT),
    )(memory, query_embed.reshape(1, d),
      p["dec_wq"], p["dec_bq"].reshape(1, -1),
      p["dec_wkv"], p["dec_bkv"],
      p["dec_wo"], p["dec_bo"].reshape(1, -1),
      p["dec_ln1_g"].reshape(1, -1), p["dec_ln1_b"].reshape(1, -1),
      p["dec_w1"], p["dec_b1"].reshape(1, -1),
      p["dec_w2"], p["dec_b2"].reshape(1, -1),
      p["dec_ln2_g"].reshape(1, -1), p["dec_ln2_b"].reshape(1, -1))

    return hs, memory


# ----------------------------------------------------------------------------
# FilterPredictor forward (predict_filter)
# ----------------------------------------------------------------------------

def filter_predictor_forward(p, cfg, train_feats, test_feats, pos_train, pos_test,
                             train_label, train_ltrb_target):
    # TODO(synk): pos_train / pos_test are accepted but unused, matching the real
    # ToMP call where pos_embed=None is passed to the transformer stand-in.
    d_model = cfg["d_model"]
    feature_sz = cfg["feature_sz"]

    # mirrors torch: if train_ltrb_target.dim() == 3: unsqueeze(1)
    if train_ltrb_target.ndim == 3:
        train_ltrb_target = train_ltrb_target[:, None]

    n_tr, b, hh, ww = train_label.shape
    s_tr = n_tr * hh * ww

    # torch: train_label.permute(1,0,2,3).flatten(1).permute(1,0).unsqueeze(2)
    # kept batch-major: (B, S_tr, 1) with the same (n, h, w) sequence ordering.
    train_label_seq = jnp.transpose(train_label, (1, 0, 2, 3)).reshape(b, s_tr, 1)

    # torch: train_ltrb_target.permute(1,2,0,3,4).flatten(2) -> (B, 4, S_tr)
    # channels-last rows for the 1x1-conv MLP (same (n, h, w) ordering):
    ltrb_rows = jnp.transpose(train_ltrb_target, (1, 0, 3, 4, 2)).reshape(b * s_tr, 4)
    ltrb_enc = box_encoding_apply(p, ltrb_rows).reshape(b, s_tr, d_model)   # (B,S_tr,D)

    fg_token = p["query_embed_fg"].reshape(1, 1, -1)
    test_token = p["query_embed_test"].reshape(1, 1, -1)

    seqs = []
    hw = None
    for train_feat, test_feat in zip(train_feats, test_feats):
        if train_feat.ndim == 3:
            train_feat = train_feat[:, None]
        if test_feat.ndim == 3:
            test_feat = test_feat[:, None]
        hw = test_feat.shape[2]
        # (n, B, hw, D) -> batch-major (B, n*hw, D); sequence ordering (n, hw)
        train_feat_seq = jnp.transpose(train_feat, (1, 0, 2, 3)).reshape(b, -1, d_model)
        test_feat_seq = jnp.transpose(test_feat, (1, 0, 2, 3)).reshape(b, -1, d_model)
        feat = assemble_sequences(train_feat_seq, train_label_seq, ltrb_enc,
                                  test_feat_seq, fg_token, test_token)
        seqs.append(feat)

    # TODO(synk): the original code passes the list of per-scale sequences to the
    # external transformer; the stand-in concatenates them along the sequence axis.
    src = seqs[0] if len(seqs) == 1 else jnp.concatenate(seqs, axis=1)
    hs, enc_mem = transformer_apply(p, src, p["query_embed_fg"])    # (B,1,D), (B,S,D)

    batch = src.shape[0]
    dec_out = hs.reshape(batch, -1, 1, 1)                           # (B, D, 1, 1)
    enc_opt = enc_mem[:, -hw:, :]                                   # (B, hw, D)
    enc_out = jnp.transpose(enc_opt, (0, 2, 1)).reshape(
        1, batch, -1, feature_sz, feature_sz)                       # (1, B, D, fs, fs)
    return dec_out, enc_out


# ----------------------------------------------------------------------------
# Deterministic parameter init
# ----------------------------------------------------------------------------

def init_params(seed, d_model, d_ff):
    key = jax.random.PRNGKey(seed)
    ctr = [0]

    def nrm(shape, scale=0.1):
        ctr[0] += 1
        return (jax.random.normal(jax.random.fold_in(key, ctr[0]), shape) * scale
                ).astype(jnp.float32)

    def pos(shape):
        ctr[0] += 1
        return (1.0 + 0.1 * jnp.abs(
            jax.random.normal(jax.random.fold_in(key, ctr[0]), shape))).astype(jnp.float32)

    d4 = d_model // 4
    p = {
        # box_encoding MLP([4, d/4, d, d]) -- Conv1d weights stored (in, out)
        "box_w1": nrm((4, d4)), "box_b1": nrm((d4,)),
        "bn1_g": pos((d4,)), "bn1_b": nrm((d4,)), "bn1_m": nrm((d4,)), "bn1_v": pos((d4,)),
        "box_w2": nrm((d4, d_model)), "box_b2": nrm((d_model,)),
        "bn2_g": pos((d_model,)), "bn2_b": nrm((d_model,)),
        "bn2_m": nrm((d_model,)), "bn2_v": pos((d_model,)),
        "box_w3": nrm((d_model, d_model)), "box_b3": nrm((d_model,)),
        # embeddings
        "query_embed_fg": nrm((1, d_model), 1.0),
        "query_embed_test": nrm((1, d_model), 1.0),
    }
    # transformer stand-in params (fused QKV / KV weights are stacked)
    p["enc_wqkv"] = jnp.stack([nrm((d_model, d_model)) for _ in range(3)])
    p["enc_bqkv"] = jnp.stack([nrm((1, d_model)) for _ in range(3)])
    p["enc_wo"] = nrm((d_model, d_model)); p["enc_bo"] = nrm((d_model,))
    p["dec_wq"] = nrm((d_model, d_model)); p["dec_bq"] = nrm((d_model,))
    p["dec_wkv"] = jnp.stack([nrm((d_model, d_model)) for _ in range(2)])
    p["dec_bkv"] = jnp.stack([nrm((1, d_model)) for _ in range(2)])
    p["dec_wo"] = nrm((d_model, d_model)); p["dec_bo"] = nrm((d_model,))
    for pre in ("enc", "dec"):
        p[f"{pre}_ln1_g"] = jnp.ones((d_model,), jnp.float32)
        p[f"{pre}_ln1_b"] = jnp.zeros((d_model,), jnp.float32)
        p[f"{pre}_ln2_g"] = jnp.ones((d_model,), jnp.float32)
        p[f"{pre}_ln2_b"] = jnp.zeros((d_model,), jnp.float32)
        p[f"{pre}_w1"] = nrm((d_model, d_ff)); p[f"{pre}_b1"] = nrm((d_ff,))
        p[f"{pre}_w2"] = nrm((d_ff, d_model)); p[f"{pre}_b2"] = nrm((d_model,))
    return p


# ----------------------------------------------------------------------------
# Demo
# ----------------------------------------------------------------------------

if __name__ == "__main__":
    d_model = 32
    d_ff = 64
    feature_sz = 4           # -> hw = 16
    batch = 2
    n_train = 1
    n_test = 1
    hw = feature_sz * feature_sz

    cfg = {"d_model": d_model, "feature_sz": feature_sz}
    params = init_params(0, d_model, d_ff)

    key = jax.random.PRNGKey(0)
    k1, k2, k3, k4 = jax.random.split(key, 4)
    # feature inputs: (n_imgs, batch, H*W, d_model)  (see layout note above)
    train_feats = [jax.random.normal(k1, (n_train, batch, hw, d_model), jnp.float32)]
    test_feats = [jax.random.normal(k2, (n_test, batch, hw, d_model), jnp.float32)]
    train_label = jax.random.uniform(k3, (n_train, batch, feature_sz, feature_sz),
                                     jnp.float32)
    train_ltrb_target = jax.random.uniform(
        k4, (n_train, batch, 4, feature_sz, feature_sz), jnp.float32)
    pos_train = jnp.zeros((n_train, batch, hw, d_model), jnp.float32)   # unused
    pos_test = jnp.zeros((n_test, batch, hw, d_model), jnp.float32)     # unused

    dec_out, enc_out = filter_predictor_forward(
        params, cfg, train_feats, test_feats, pos_train, pos_test,
        train_label, train_ltrb_target)
    jax.block_until_ready((dec_out, enc_out))

    assert dec_out.shape == (batch, d_model, 1, 1)
    assert enc_out.shape == (1, batch, d_model, feature_sz, feature_sz)
    print("KERNEL_OK")
</pallas_src>

<mosaic_0001>
module attributes {stable_mosaic.version = 11 : i64} {
  func.func @_box_mlp_kernel(%arg0: i32, %arg1: memref<32x4xf32, #tpu.memory_space<vmem>>, %arg2: memref<4x8xf32, #tpu.memory_space<vmem>>, %arg3: memref<1x8xf32, #tpu.memory_space<vmem>>, %arg4: memref<1x8xf32, #tpu.memory_space<vmem>>, %arg5: memref<1x8xf32, #tpu.memory_space<vmem>>, %arg6: memref<8x32xf32, #tpu.memory_space<vmem>>, %arg7: memref<1x32xf32, #tpu.memory_space<vmem>>, %arg8: memref<1x32xf32, #tpu.memory_space<vmem>>, %arg9: memref<1x32xf32, #tpu.memory_space<vmem>>, %arg10: memref<32x32xf32, #tpu.memory_space<vmem>>, %arg11: memref<1x32xf32, #tpu.memory_space<vmem>>, %arg12: memref<32x32xf32, #tpu.memory_space<vmem>>) attributes {dimension_semantics = [#tpu.dimension_semantics<parallel>], iteration_bounds = array<i64: 1>, scalar_prefetch = 0 : i64, scratch_operands = 0 : i64, tpu.core_type = #tpu.core_type<tc>, window_params = [{transform_indices = @transform_0, window_bounds = array<i64: 32, 4>}, {pipeline_mode = #tpu.pipeline_mode<synchronous>, transform_indices = @transform_1, window_bounds = array<i64: 4, 8>}, {pipeline_mode = #tpu.pipeline_mode<synchronous>, transform_indices = @transform_2, window_bounds = array<i64: 1, 8>}, {pipeline_mode = #tpu.pipeline_mode<synchronous>, transform_indices = @transform_3, window_bounds = array<i64: 1, 8>}, {pipeline_mode = #tpu.pipeline_mode<synchronous>, transform_indices = @transform_4, window_bounds = array<i64: 1, 8>}, {pipeline_mode = #tpu.pipeline_mode<synchronous>, transform_indices = @transform_5, window_bounds = array<i64: 8, 32>}, {pipeline_mode = #tpu.pipeline_mode<synchronous>, transform_indices = @transform_6, window_bounds = array<i64: 1, 32>}, {pipeline_mode = #tpu.pipeline_mode<synchronous>, transform_indices = @transform_7, window_bounds = array<i64: 1, 32>}, {pipeline_mode = #tpu.pipeline_mode<synchronous>, transform_indices = @transform_8, window_bounds = array<i64: 1, 32>}, {pipeline_mode = #tpu.pipeline_mode<synchronous>, transform_indices = @transform_9, window_bounds = array<i64: 32, 32>}, {pipeline_mode = #tpu.pipeline_mode<synchronous>, transform_indices = @transform_10, window_bounds = array<i64: 1, 32>}, {transform_indices = @transform_11, window_bounds = array<i64: 32, 32>}]} {
    %c0 = arith.constant 0 : index
    %c0_0 = arith.constant 0 : index
    %0 = vector.load %arg1[%c0, %c0_0] : memref<32x4xf32, #tpu.memory_space<vmem>>, vector<32x4xf32>
    %c0_1 = arith.constant 0 : index
    %c0_2 = arith.constant 0 : index
    %1 = vector.load %arg2[%c0_1, %c0_2] : memref<4x8xf32, #tpu.memory_space<vmem>>, vector<4x8xf32>
    %cst = arith.constant dense<0.000000e+00> : vector<32x8xf32>
    %2 = tpu.matmul %0, %1, %cst {dimension_numbers = #tpu.dot_dimension_numbers<[1], [0], [0], [1], [0, 0, 1, 1], [], []>} : vector<32x4xf32>, vector<4x8xf32>, vector<32x8xf32> -> vector<32x8xf32>
    %c0_3 = arith.constant 0 : index
    %c0_4 = arith.constant 0 : index
    %3 = vector.load %arg3[%c0_3, %c0_4] : memref<1x8xf32, #tpu.memory_space<vmem>>, vector<1x8xf32>
    %4 = vector.broadcast %3 : vector<1x8xf32> to vector<32x8xf32>
    %5 = arith.addf %2, %4 : vector<32x8xf32>
    %c0_5 = arith.constant 0 : index
    %c0_6 = arith.constant 0 : index
    %6 = vector.load %arg4[%c0_5, %c0_6] : memref<1x8xf32, #tpu.memory_space<vmem>>, vector<1x8xf32>
    %7 = vector.broadcast %6 : vector<1x8xf32> to vector<32x8xf32>
    %8 = arith.mulf %5, %7 : vector<32x8xf32>
    %c0_7 = arith.constant 0 : index
    %c0_8 = arith.constant 0 : index
    %9 = vector.load %arg5[%c0_7, %c0_8] : memref<1x8xf32, #tpu.memory_space<vmem>>, vector<1x8xf32>
    %10 = vector.broadcast %9 : vector<1x8xf32> to vector<32x8xf32>
    %11 = arith.addf %8, %10 : vector<32x8xf32>
    %cst_9 = arith.constant 0.000000e+00 : f32
    %12 = vector.broadcast %cst_9 : f32 to vector<32x8xf32>
    %13 = arith.maximumf %11, %12 : vector<32x8xf32>
    %c0_10 = arith.constant 0 : index
    %c0_11 = arith.constant 0 : index
    %14 = vector.load %arg6[%c0_10, %c0_11] : memref<8x32xf32, #tpu.memory_space<vmem>>, vector<8x32xf32>
    %cst_12 = arith.constant dense<0.000000e+00> : vector<32x32xf32>
    %15 = tpu.matmul %13, %14, %cst_12 {dimension_numbers = #tpu.dot_dimension_numbers<[1], [0], [0], [1], [0, 0, 1, 1], [], []>} : vector<32x8xf32>, vector<8x32xf32>, vector<32x32xf32> -> vector<32x32xf32>
    %c0_13 = arith.constant 0 : index
    %c0_14 = arith.constant 0 : index
    %16 = vector.load %arg7[%c0_13, %c0_14] : memref<1x32xf32, #tpu.memory_space<vmem>>, vector<1x32xf32>
    %17 = vector.broadcast %16 : vector<1x32xf32> to vector<32x32xf32>
    %18 = arith.addf %15, %17 : vector<32x32xf32>
    %c0_15 = arith.constant 0 : index
    %c0_16 = arith.constant 0 : index
    %19 = vector.load %arg8[%c0_15, %c0_16] : memref<1x32xf32, #tpu.memory_space<vmem>>, vector<1x32xf32>
    %20 = vector.broadcast %19 : vector<1x32xf32> to vector<32x32xf32>
    %21 = arith.mulf %18, %20 : vector<32x32xf32>
    %c0_17 = arith.constant 0 : index
    %c0_18 = arith.constant 0 : index
    %22 = vector.load %arg9[%c0_17, %c0_18] : memref<1x32xf32, #tpu.memory_space<vmem>>, vector<1x32xf32>
    %23 = vector.broadcast %22 : vector<1x32xf32> to vector<32x32xf32>
    %24 = arith.addf %21, %23 : vector<32x32xf32>
    %cst_19 = arith.constant 0.000000e+00 : f32
    %25 = vector.broadcast %cst_19 : f32 to vector<32x32xf32>
    %26 = arith.maximumf %24, %25 : vector<32x32xf32>
    %c0_20 = arith.constant 0 : index
    %c0_21 = arith.constant 0 : index
    %27 = vector.load %arg10[%c0_20, %c0_21] : memref<32x32xf32, #tpu.memory_space<vmem>>, vector<32x32xf32>
    %cst_22 = arith.constant dense<0.000000e+00> : vector<32x32xf32>
    %28 = tpu.matmul %26, %27, %cst_22 {dimension_numbers = #tpu.dot_dimension_numbers<[1], [0], [0], [1], [0, 0, 1, 1], [], []>} : vector<32x32xf32>, vector<32x32xf32>, vector<32x32xf32> -> vector<32x32xf32>
    %c0_23 = arith.constant 0 : index
    %c0_24 = arith.constant 0 : index
    %29 = vector.load %arg11[%c0_23, %c0_24] : memref<1x32xf32, #tpu.memory_space<vmem>>, vector<1x32xf32>
    %30 = vector.broadcast %29 : vector<1x32xf32> to vector<32x32xf32>
    %31 = arith.addf %28, %30 : vector<32x32xf32>
    %c0_25 = arith.constant 0 : index
    %c0_26 = arith.constant 0 : index
    %32 = vector.load %arg12[%c0_25, %c0_26] : memref<32x32xf32, #tpu.memory_space<vmem>>, vector<32x32xf32>
    tpu.vector_store %arg12[%c0_25, %c0_26], %31 {strides = array<i32>} : memref<32x32xf32, #tpu.memory_space<vmem>>, vector<32x32xf32>,
    return
  }
  func.func @transform_0(%arg0: i32) -> (i32, i32) {
    %c0_i32 = arith.constant 0 : i32
    %c0_i32_0 = arith.constant 0 : i32
    return %arg0, %c0_i32 : i32, i32
  }
  func.func @transform_1(%arg0: i32) -> (i32, i32) {
    %c0_i32 = arith.constant 0 : i32
    %c0_i32_0 = arith.constant 0 : i32
    %c0_i32_1 = arith.constant 0 : i32
    return %c0_i32, %c0_i32_0 : i32, i32
  }
  func.func @transform_2(%arg0: i32) -> (i32, i32) {
    %c0_i32 = arith.constant 0 : i32
    %c0_i32_0 = arith.constant 0 : i32
    %c0_i32_1 = arith.constant 0 : i32
    return %c0_i32, %c0_i32_0 : i32, i32
  }
  func.func @transform_3(%arg0: i32) -> (i32, i32) {
    %c0_i32 = arith.constant 0 : i32
    %c0_i32_0 = arith.constant 0 : i32
    %c0_i32_1 = arith.constant 0 : i32
    return %c0_i32, %c0_i32_0 : i32, i32
  }
  func.func @transform_4(%arg0: i32) -> (i32, i32) {
    %c0_i32 = arith.constant 0 : i32
    %c0_i32_0 = arith.constant 0 : i32
    %c0_i32_1 = arith.constant 0 : i32
    return %c0_i32, %c0_i32_0 : i32, i32
  }
  func.func @transform_5(%arg0: i32) -> (i32, i32) {
    %c0_i32 = arith.constant 0 : i32
    %c0_i32_0 = arith.constant 0 : i32
    %c0_i32_1 = arith.constant 0 : i32
    return %c0_i32, %c0_i32_0 : i32, i32
  }
  func.func @transform_6(%arg0: i32) -> (i32, i32) {
    %c0_i32 = arith.constant 0 : i32
    %c0_i32_0 = arith.constant 0 : i32
    %c0_i32_1 = arith.constant 0 : i32
    return %c0_i32, %c0_i32_0 : i32, i32
  }
  func.func @transform_7(%arg0: i32) -> (i32, i32) {
    %c0_i32 = arith.constant 0 : i32
    %c0_i32_0 = arith.constant 0 : i32
    %c0_i32_1 = arith.constant 0 : i32
    return %c0_i32, %c0_i32_0 : i32, i32
  }
  func.func @transform_8(%arg0: i32) -> (i32, i32) {
    %c0_i32 = arith.constant 0 : i32
    %c0_i32_0 = arith.constant 0 : i32
    %c0_i32_1 = arith.constant 0 : i32
    return %c0_i32, %c0_i32_0 : i32, i32
  }
  func.func @transform_9(%arg0: i32) -> (i32, i32) {
    %c0_i32 = arith.constant 0 : i32
    %c0_i32_0 = arith.constant 0 : i32
    %c0_i32_1 = arith.constant 0 : i32
    return %c0_i32, %c0_i32_0 : i32, i32
  }
  func.func @transform_10(%arg0: i32) -> (i32, i32) {
    %c0_i32 = arith.constant 0 : i32
    %c0_i32_0 = arith.constant 0 : i32
    %c0_i32_1 = arith.constant 0 : i32
    return %c0_i32, %c0_i32_0 : i32, i32
  }
  func.func @transform_11(%arg0: i32) -> (i32, i32) {
    %c0_i32 = arith.constant 0 : i32
    %c0_i32_0 = arith.constant 0 : i32
    return %arg0, %c0_i32 : i32, i32
  }
}

</mosaic_0001>

<llo_original>
// kernel: tpu_custom_call.1
$region0: #{tpu_custom_call.1}
  #allocation0 [shape = 'u32[]', space=smem, size = 0x4, offset = 0x4, fixed_abs, tag = 'smem constant byte address 0x4 - core index']
  #allocation1 [shape = 'u32[144,128]{1,0:T(1,128)}', space=vmem, size = 0x12000, scoped, tag = 'internal scratch']
  %s0 = inlined_call_operand.vmem [shape: f32[32,4], index: 0, kind: input, shape index: {}]
  %s1 = inlined_call_operand.vmem [shape: f32[4,8], index: 1, kind: input, shape index: {}]
  %s2 = inlined_call_operand.vmem [shape: f32[1,8], index: 2, kind: input, shape index: {}]
  %s3 = inlined_call_operand.vmem [shape: f32[1,8], index: 3, kind: input, shape index: {}]
  %s4 = inlined_call_operand.vmem [shape: f32[1,8], index: 4, kind: input, shape index: {}]
  %s5 = inlined_call_operand.vmem [shape: f32[8,32], index: 5, kind: input, shape index: {}]
  %s6 = inlined_call_operand.vmem [shape: f32[1,32], index: 6, kind: input, shape index: {}]
  %s7 = inlined_call_operand.vmem [shape: f32[1,32], index: 7, kind: input, shape index: {}]
  %s8 = inlined_call_operand.vmem [shape: f32[1,32], index: 8, kind: input, shape index: {}]
  %s9 = inlined_call_operand.vmem [shape: f32[32,32], index: 9, kind: input, shape index: {}]
  %s10 = inlined_call_operand.vmem [shape: f32[1,32], index: 10, kind: input, shape index: {}]
  %s11 = inlined_call_operand.hbm [shape: f32[32,32], index: 11, kind: output, shape index: {}]
  %s12 = sld [smem:[#allocation0]]
  $region54: #{tpu_custom_call.1} parent=0
    _
  %s14 = ssub.s32 1, %s12
  %s15 = scalar_select 0, %s14, %s12
  $region1: #{tpu_custom_call.1} parent=0
    #allocation2 [shape = 'u8[16384]{0}', space=vmem, size = 0x4000, scoped, tag = 'output window, operand 0, single buffered']
    #allocation3 [shape = 's32[1]{0}', space=sflag, size = 0x4, scoped, tag = 'scoped memory for tpu_custom_call.1']
    %16 = vsyncpa [#allocation3], 0
    // Predicated region
    $region2: #{tpu_custom_call.1} parent=1 // pred_check
      _
    $region3: #{tpu_custom_call.1} parent=1 // pred_check_branch
      %18 = sbr.rel (0) target = $region5
    $region4: #{tpu_custom_call.1} parent=1 // pred_region
      _
    $region5: #{tpu_custom_call.1} parent=1 // pred_fallthru
      _
    // Predicated region
    $region6: #{tpu_custom_call.1} parent=1 // pred_check
      _
    $region7: #{tpu_custom_call.1} parent=1 // pred_check_branch
      %20 = sbr.rel (0) target = $region9
    $region8: #{tpu_custom_call.1} parent=1 // pred_region
      _
    $region9: #{tpu_custom_call.1} parent=1 // pred_fallthru
      _
    // Predicated region
    $region10: #{tpu_custom_call.1} parent=1 // pred_check
      _
    $region11: #{tpu_custom_call.1} parent=1 // pred_check_branch
      %22 = sbr.rel (0) target = $region13
    $region12: #{tpu_custom_call.1} parent=1 // pred_region
      _
    $region13: #{tpu_custom_call.1} parent=1 // pred_fallthru
      _
    // Predicated region
    $region14: #{tpu_custom_call.1} parent=1 // pred_check
      _
    $region15: #{tpu_custom_call.1} parent=1 // pred_check_branch
      %24 = sbr.rel (0) target = $region17
    $region16: #{tpu_custom_call.1} parent=1 // pred_region
      _
    $region17: #{tpu_custom_call.1} parent=1 // pred_fallthru
      _
    // Predicated region
    $region18: #{tpu_custom_call.1} parent=1 // pred_check
      _
    $region19: #{tpu_custom_call.1} parent=1 // pred_check_branch
      %26 = sbr.rel (0) target = $region21
    $region20: #{tpu_custom_call.1} parent=1 // pred_region
      _
    $region21: #{tpu_custom_call.1} parent=1 // pred_fallthru
      _
    // Predicated region
    $region22: #{tpu_custom_call.1} parent=1 // pred_check
      _
    $region23: #{tpu_custom_call.1} parent=1 // pred_check_branch
      %28 = sbr.rel (0) target = $region25
    $region24: #{tpu_custom_call.1} parent=1 // pred_region
      _
    $region25: #{tpu_custom_call.1} parent=1 // pred_fallthru
      _
    // Predicated region
    $region26: #{tpu_custom_call.1} parent=1 // pred_check
      _
    $region27: #{tpu_custom_call.1} parent=1 // pred_check_branch
      %30 = sbr.rel (0) target = $region29
    $region28: #{tpu_custom_call.1} parent=1 // pred_region
      _
    $region29: #{tpu_custom_call.1} parent=1 // pred_fallthru
      _
    // Predicated region
    $region30: #{tpu_custom_call.1} parent=1 // pred_check
      _
    $region31: #{tpu_custom_call.1} parent=1 // pred_check_branch
      %32 = sbr.rel (0) target = $region33
    $region32: #{tpu_custom_call.1} parent=1 // pred_region
      _
    $region33: #{tpu_custom_call.1} parent=1 // pred_fallthru
      _
    // Predicated region
    $region34: #{tpu_custom_call.1} parent=1 // pred_check
      _
    $region35: #{tpu_custom_call.1} parent=1 // pred_check_branch
      %34 = sbr.rel (0) target = $region37
    $region36: #{tpu_custom_call.1} parent=1 // pred_region
      _
    $region37: #{tpu_custom_call.1} parent=1 // pred_fallthru
      _
    // Predicated region
    $region38: #{tpu_custom_call.1} parent=1 // pred_check
      _
    $region39: #{tpu_custom_call.1} parent=1 // pred_check_branch
      %36 = sbr.rel (0) target = $region41
    $region40: #{tpu_custom_call.1} parent=1 // pred_region
      _
    $region41: #{tpu_custom_call.1} parent=1 // pred_fallthru
      _
    // Predicated region
    $region42: #{tpu_custom_call.1} parent=1 // pred_check
      _
    $region43: #{tpu_custom_call.1} parent=1 // pred_check_branch
      %38 = sbr.rel (0) target = $region45
    $region44: #{tpu_custom_call.1} parent=1 // pred_region
      _
    $region45: #{tpu_custom_call.1} parent=1 // pred_fallthru
      _
    %v39 = vld [vmem:[%s0] sm:$0xff]
    %v40 = vld [vmem:[%s0 + $0x8] sm:$0xff]
    %v41 = vld [vmem:[%s0 + $0x10] sm:$0xff]
    %v42 = vld [vmem:[%s0 + $0x18] sm:$0xff]
    %v43 = vld [vmem:[%s1] sm:$0xf]
    %v44 = vld [vmem:[%s2] sm:$0x1]
    %v46 = vlaneseq
    %v47 = vshrl.u32 %v46, 7
    %v48 = vsub.s32 0, %v47
    %v49 = vrot.slane %v44, %v48
    %vm51 = vcmask 31744
    %v53 = vsel %vm51, %v39, 0
    %v56 = vsel %vm51, %v40, 0
    %v59 = vsel %vm51, %v41, 0
    %v62 = vsel %vm51, %v42, 0
    %vm64 = vcmask 1043456
    %v66 = vsel %vm64, %v43, 0
    %68 = vmatprep.subr.mxu0 0.0
    %69 = vmatpush1.msra.mxu0 %v66
    %70 = vmatprep.subr.mxu0 0.0
    %71 = vmatpush1.msra.mxu0 0.0
    %72 = vmatprep.subr.mxu0 0.0
    %73 = vmatpush1.msra.mxu0 0.0
    %74 = vmatprep.subr.mxu0 0.0
    %75 = vmatpush1.msra.mxu0 0.0
    %76 = vmatprep.subr.mxu0 0.0
    %77 = vmatpush1.msra.mxu0 0.0
    %78 = vmatprep.subr.mxu0 0.0
    %79 = vmatpush1.msra.mxu0 0.0
    %80 = vmatprep.subr.mxu0 0.0
    %81 = vmatpush1.msra.mxu0 0.0
    %82 = vmatprep.subr.mxu0 0.0
    %83 = vmatpush1.msra.mxu0 0.0
    %84 = vmatprep.subr.mxu0 0.0
    %85 = vmatpush1.msra.mxu0 0.0
    %86 = vmatprep.subr.mxu0 0.0
    %87 = vmatpush1.msra.mxu0 0.0
    %88 = vmatprep.subr.mxu0 0.0
    %89 = vmatpush1.msra.mxu0 0.0
    %90 = vmatprep.subr.mxu0 0.0
    %91 = vmatpush1.msra.mxu0 0.0
    %92 = vmatprep.subr.mxu0 0.0
    %93 = vmatpush1.msra.mxu0 0.0
    %94 = vmatprep.subr.mxu0 0.0
    %95 = vmatpush1.msra.mxu0 0.0
    %96 = vmatprep.subr.mxu0 0.0
    %97 = vmatpush1.msra.mxu0 0.0
    %98 = vmatprep.subr.mxu0 0.0
    %99 = vmatpush1.msra.mxu0 0.0
    %100 = vmatprep.subr.mxu0 0.0
    %101 = vmatpush1.msra.mxu0 0.0
    %102 = vmatprep.subr.mxu0 0.0
    %103 = vmatpush1.msra.mxu0 0.0
    %104 = vmatprep.subr.mxu0 0.0
    %105 = vmatpush1.msra.mxu0 0.0
    %106 = vmatprep.subr.mxu0 0.0
    %107 = vmatpush1.msra.mxu0 0.0
    %108 = vmatprep.subr.mxu0 0.0
    %109 = vmatpush1.msra.mxu0 0.0
    %110 = vmatprep.subr.mxu0 0.0
    %111 = vmatpush1.msra.mxu0 0.0
    %112 = vmatprep.subr.mxu0 0.0
    %113 = vmatpush1.msra.mxu0 0.0
    %114 = vmatprep.subr.mxu0 0.0
    %115 = vmatpush1.msra.mxu0 0.0
    %116 = vmatprep.subr.mxu0 0.0
    %117 = vmatpush1.msra.mxu0 0.0
    %118 = vmatprep.subr.mxu0 0.0
    %119 = vmatpush1.msra.mxu0 0.0
    %120 = vmatprep.subr.mxu0 0.0
    %121 = vmatpush1.msra.mxu0 0.0
    %122 = vmatprep.subr.mxu0 0.0
    %123 = vmatpush1.msra.mxu0 0.0
    %124 = vmatprep.subr.mxu0 0.0
    %125 = vmatpush1.msra.mxu0 0.0
    %126 = vmatprep.subr.mxu0 0.0
    %127 = vmatpush1.msra.mxu0 0.0
    %128 = vmatprep.subr.mxu0 0.0
    %129 = vmatpush1.msra.mxu0 0.0
    %130 = vmatprep.subr.mxu0 0.0
    %131 = vmatpush1.msra.mxu0 0.0
    %132 = vmatprep.mubr.f32.mxu0 0.0
    %133 = vmatmul.mubr.f32.gmra.mrb[0].mxu0 %v53
    %v134 = vpop.f32.mrb[0].mxu0
    %v135 = vadd.f32 %v49, %v134
    %v136 = vpop.f32.mrb[0].mxu0
    %137 = vmatprep.mubr.f32.mxu0 0.0
    %138 = vmatmul.mubr.f32.gmra.mrb[0].mxu0 %v56
    %v139 = vpop.f32.mrb[0].mxu0
    %v140 = vadd.f32 %v49, %v139
    %v141 = vpop.f32.mrb[0].mxu0
    %142 = vmatprep.mubr.f32.mxu0 0.0
    %143 = vmatmul.mubr.f32.gmra.mrb[0].mxu0 %v59
    %v144 = vpop.f32.mrb[0].mxu0
    %v145 = vadd.f32 %v49, %v144
    %v146 = vpop.f32.mrb[0].mxu0
    %147 = vmatprep.mubr.f32.mxu0 0.0
    %148 = vmatmul.mubr.f32.gmra.mrb[0].mxu0 %v62
    %v149 = vpop.f32.mrb[0].mxu0
    %v150 = vadd.f32 %v49, %v149
    %v151 = vpop.f32.mrb[0].mxu0
    %152 = vdwg.mxu0
    %v153 = vld [vmem:[%s3] sm:$0x1]
    %v155 = vlaneseq
    %v156 = vshrl.u32 %v155, 7
    %v157 = vsub.s32 0, %v156
    %v158 = vrot.slane %v153, %v157
    %v160 = vmul.f32 %v135, %v158
    %v161 = vmul.f32 %v140, %v158
    %v162 = vmul.f32 %v145, %v158
    %v163 = vmul.f32 %v150, %v158
    %v164 = vld [vmem:[%s4] sm:$0x1]
    %v166 = vlaneseq
    %v167 = vshrl.u32 %v166, 7
    %v168 = vsub.s32 0, %v167
    %v169 = vrot.slane %v164, %v168
    %v171 = vadd.f32 %v160, %v169
    %v172 = vadd.f32 %v161, %v169
    %v173 = vadd.f32 %v162, %v169
    %v174 = vadd.f32 %v163, %v169
    %v175 = vmax.f32 %v171, 0.0
    %v176 = vmax.f32 %v172, 0.0
    %v177 = vmax.f32 %v173, 0.0
    %v178 = vmax.f32 %v174, 0.0
    %v179 = vld [vmem:[%s5] sm:$0xff]
    %v180 = vld [vmem:[%s6] sm:$0x1]
    %v182 = vlaneseq
    %v183 = vshrl.u32 %v182, 7
    %v184 = vsub.s32 0, %v183
    %v185 = vrot.slane %v180, %v184
    %vm187 = vcmask 64512
    %v189 = vsel %vm187, %v175, 0
    %v192 = vsel %vm187, %v176, 0
    %v195 = vsel %vm187, %v177, 0
    %v198 = vsel %vm187, %v178, 0
    %200 = vmatprep.subr.mxu0 0.0
    %201 = vmatpush1.msra.mxu0 %v179
    %202 = vmatprep.subr.mxu0 0.0
    %203 = vmatpush1.msra.mxu0 0.0
    %204 = vmatprep.subr.mxu0 0.0
    %205 = vmatpush1.msra.mxu0 0.0
    %206 = vmatprep.subr.mxu0 0.0
    %207 = vmatpush1.msra.mxu0 0.0
    %208 = vmatprep.subr.mxu0 0.0
    %209 = vmatpush1.msra.mxu0 0.0
    %210 = vmatprep.subr.mxu0 0.0
    %211 = vmatpush1.msra.mxu0 0.0
    %212 = vmatprep.subr.mxu0 0.0
    %213 = vmatpush1.msra.mxu0 0.0
    %214 = vmatprep.subr.mxu0 0.0
    %215 = vmatpush1.msra.mxu0 0.0
    %216 = vmatprep.subr.mxu0 0.0
    %217 = vmatpush1.msra.mxu0 0.0
    %218 = vmatprep.subr.mxu0 0.0
    %219 = vmatpush1.msra.mxu0 0.0
    %220 = vmatprep.subr.mxu0 0.0
    %221 = vmatpush1.msra.mxu0 0.0
    %222 = vmatprep.subr.mxu0 0.0
    %223 = vmatpush1.msra.mxu0 0.0
    %224 = vmatprep.subr.mxu0 0.0
    %225 = vmatpush1.msra.mxu0 0.0
    %226 = vmatprep.subr.mxu0 0.0
    %227 = vmatpush1.msra.mxu0 0.0
    %228 = vmatprep.subr.mxu0 0.0
    %229 = vmatpush1.msra.mxu0 0.0
    %230 = vmatprep.subr.mxu0 0.0
    %231 = vmatpush1.msra.mxu0 0.0
    %232 = vmatprep.subr.mxu0 0.0
    %233 = vmatpush1.msra.mxu0 0.0
    %234 = vmatprep.subr.mxu0 0.0
    %235 = vmatpush1.msra.mxu0 0.0
    %236 = vmatprep.subr.mxu0 0.0
    %237 = vmatpush1.msra.mxu0 0.0
    %238 = vmatprep.subr.mxu0 0.0
    %239 = vmatpush1.msra.mxu0 0.0
    %240 = vmatprep.subr.mxu0 0.0
    %241 = vmatpush1.msra.mxu0 0.0
    %242 = vmatprep.subr.mxu0 0.0
    %243 = vmatpush1.msra.mxu0 0.0
    %244 = vmatprep.subr.mxu0 0.0
    %245 = vmatpush1.msra.mxu0 0.0
    %246 = vmatprep.subr.mxu0 0.0
    %247 = vmatpush1.msra.mxu0 0.0
    %248 = vmatprep.subr.mxu0 0.0
    %249 = vmatpush1.msra.mxu0 0.0
    %250 = vmatprep.subr.mxu0 0.0
    %251 = vmatpush1.msra.mxu0 0.0
    %252 = vmatprep.subr.mxu0 0.0
    %253 = vmatpush1.msra.mxu0 0.0
    %254 = vmatprep.subr.mxu0 0.0
    %255 = vmatpush1.msra.mxu0 0.0
    %256 = vmatprep.subr.mxu0 0.0
    %257 = vmatpush1.msra.mxu0 0.0
    %258 = vmatprep.subr.mxu0 0.0
    %259 = vmatpush1.msra.mxu0 0.0
    %260 = vmatprep.subr.mxu0 0.0
    %261 = vmatpush1.msra.mxu0 0.0
    %262 = vmatprep.subr.mxu0 0.0
    %263 = vmatpush1.msra.mxu0 0.0
    %264 = vmatprep.mubr.f32.mxu0 0.0
    %265 = vmatmul.mubr.f32.gmra.mrb[0].mxu0 %v189
    %v266 = vpop.f32.mrb[0].mxu0
    %v267 = vadd.f32 %v185, %v266
    %v268 = vpop.f32.mrb[0].mxu0
    %269 = vmatprep.mubr.f32.mxu0 0.0
    %270 = vmatmul.mubr.f32.gmra.mrb[0].mxu0 %v192
    %v271 = vpop.f32.mrb[0].mxu0
    %v272 = vadd.f32 %v185, %v271
    %v273 = vpop.f32.mrb[0].mxu0
    %274 = vmatprep.mubr.f32.mxu0 0.0
    %275 = vmatmul.mubr.f32.gmra.mrb[0].mxu0 %v195
    %v276 = vpop.f32.mrb[0].mxu0
    %v277 = vadd.f32 %v185, %v276
    %v278 = vpop.f32.mrb[0].mxu0
    %279 = vmatprep.mubr.f32.mxu0 0.0
    %280 = vmatmul.mubr.f32.gmra.mrb[0].mxu0 %v198
    %v281 = vpop.f32.mrb[0].mxu0
    %v282 = vadd.f32 %v185, %v281
    %v283 = vpop.f32.mrb[0].mxu0
    %284 = vdwg.mxu0
    %v285 = vld [vmem:[%s7] sm:$0x1]
    %v287 = vlaneseq
    %v288 = vshrl.u32 %v287, 7
    %v289 = vsub.s32 0, %v288
    %v290 = vrot.slane %v285, %v289
    %v292 = vmul.f32 %v267, %v290
    %v293 = vmul.f32 %v272, %v290
    %v294 = vmul.f32 %v277, %v290
    %v295 = vmul.f32 %v282, %v290
    %v296 = vld [vmem:[%s8] sm:$0x1]
    %v298 = vlaneseq
    %v299 = vshrl.u32 %v298, 7
    %v300 = vsub.s32 0, %v299
    %v301 = vrot.slane %v296, %v300
    %v303 = vadd.f32 %v292, %v301
    %v304 = vadd.f32 %v293, %v301
    %v305 = vadd.f32 %v294, %v301
    %v306 = vadd.f32 %v295, %v301
    %v307 = vmax.f32 %v303, 0.0
    %v308 = vmax.f32 %v304, 0.0
    %v309 = vmax.f32 %v305, 0.0
    %v310 = vmax.f32 %v306, 0.0
    %v311 = vld [vmem:[%s9] sm:$0xff]
    %v312 = vld [vmem:[%s9 + $0x8] sm:$0xff]
    %v313 = vld [vmem:[%s9 + $0x10] sm:$0xff]
    %v314 = vld [vmem:[%s9 + $0x18] sm:$0xff]
    %v315 = vld [vmem:[%s10] sm:$0x1]
    %v317 = vlaneseq
    %v318 = vshrl.u32 %v317, 7
    %v319 = vsub.s32 0, %v318
    %v320 = vrot.slane %v315, %v319
    %vm322 = vcmask 261120
    %v324 = vsel %vm322, %v307, 0
    %v327 = vsel %vm322, %v308, 0
    %v330 = vsel %vm322, %v309, 0
    %v333 = vsel %vm322, %v310, 0
    %335 = vmatprep.subr.mxu0 0.0
    %336 = vmatpush1.msra.mxu0 %v311
    %337 = vmatprep.subr.mxu0 0.0
    %338 = vmatpush1.msra.mxu0 %v312
    %339 = vmatprep.subr.mxu0 0.0
    %340 = vmatpush1.msra.mxu0 %v313
    %341 = vmatprep.subr.mxu0 0.0
    %342 = vmatpush1.msra.mxu0 %v314
    %343 = vmatprep.subr.mxu0 0.0
    %344 = vmatpush1.msra.mxu0 0.0
    %345 = vmatprep.subr.mxu0 0.0
    %346 = vmatpush1.msra.mxu0 0.0
    %347 = vmatprep.subr.mxu0 0.0
    %348 = vmatpush1.msra.mxu0 0.0
    %349 = vmatprep.subr.mxu0 0.0
    %350 = vmatpush1.msra.mxu0 0.0
    %351 = vmatprep.subr.mxu0 0.0
    %352 = vmatpush1.msra.mxu0 0.0
    %353 = vmatprep.subr.mxu0 0.0
    %354 = vmatpush1.msra.mxu0 0.0
    %355 = vmatprep.subr.mxu0 0.0
    %356 = vmatpush1.msra.mxu0 0.0
    %357 = vmatprep.subr.mxu0 0.0
    %358 = vmatpush1.msra.mxu0 0.0
    %359 = vmatprep.subr.mxu0 0.0
    %360 = vmatpush1.msra.mxu0 0.0
    %361 = vmatprep.subr.mxu0 0.0
    %362 = vmatpush1.msra.mxu0 0.0
    %363 = vmatprep.subr.mxu0 0.0
    %364 = vmatpush1.msra.mxu0 0.0
    %365 = vmatprep.subr.mxu0 0.0
    %366 = vmatpush1.msra.mxu0 0.0
    %367 = vmatprep.subr.mxu0 0.0
    %368 = vmatpush1.msra.mxu0 0.0
    %369 = vmatprep.subr.mxu0 0.0
    %370 = vmatpush1.msra.mxu0 0.0
    %371 = vmatprep.subr.mxu0 0.0
    %372 = vmatpush1.msra.mxu0 0.0
    %373 = vmatprep.subr.mxu0 0.0
    %374 = vmatpush1.msra.mxu0 0.0
    %375 = vmatprep.subr.mxu0 0.0
    %376 = vmatpush1.msra.mxu0 0.0
    %377 = vmatprep.subr.mxu0 0.0
    %378 = vmatpush1.msra.mxu0 0.0
    %379 = vmatprep.subr.mxu0 0.0
    %380 = vmatpush1.msra.mxu0 0.0
    %381 = vmatprep.subr.mxu0 0.0
    %382 = vmatpush1.msra.mxu0 0.0
    %383 = vmatprep.subr.mxu0 0.0
    %384 = vmatpush1.msra.mxu0 0.0
    %385 = vmatprep.subr.mxu0 0.0
    %386 = vmatpush1.msra.mxu0 0.0
    %387 = vmatprep.subr.mxu0 0.0
    %388 = vmatpush1.msra.mxu0 0.0
    %389 = vmatprep.subr.mxu0 0.0
    %390 = vmatpush1.msra.mxu0 0.0
    %391 = vmatprep.subr.mxu0 0.0
    %392 = vmatpush1.msra.mxu0 0.0
    %393 = vmatprep.subr.mxu0 0.0
    %394 = vmatpush1.msra.mxu0 0.0
    %395 = vmatprep.subr.mxu0 0.0
    %396 = vmatpush1.msra.mxu0 0.0
    %397 = vmatprep.subr.mxu0 0.0
    %398 = vmatpush1.msra.mxu0 0.0
    %399 = vmatprep.mubr.f32.mxu0 0.0
    %400 = vmatmul.mubr.f32.gmra.mrb[0].mxu0 %v324
    %v401 = vpop.f32.mrb[0].mxu0
    %v402 = vadd.f32 %v320, %v401
    %v403 = vpop.f32.mrb[0].mxu0
    %404 = vmatprep.mubr.f32.mxu0 0.0
    %405 = vmatmul.mubr.f32.gmra.mrb[0].mxu0 %v327
    %v406 = vpop.f32.mrb[0].mxu0
    %v407 = vadd.f32 %v320, %v406
    %v408 = vpop.f32.mrb[0].mxu0
    %409 = vmatprep.mubr.f32.mxu0 0.0
    %410 = vmatmul.mubr.f32.gmra.mrb[0].mxu0 %v330
    %v411 = vpop.f32.mrb[0].mxu0
    %v412 = vadd.f32 %v320, %v411
    %v413 = vpop.f32.mrb[0].mxu0
    %414 = vmatprep.mubr.f32.mxu0 0.0
    %415 = vmatmul.mubr.f32.gmra.mrb[0].mxu0 %v333
    %v416 = vpop.f32.mrb[0].mxu0
    %v417 = vadd.f32 %v320, %v416
    %v418 = vpop.f32.mrb[0].mxu0
    %419 = vdwg.mxu0
    %420 = vst.msk [vmem:[#allocation2] sm:$0xff] %vm322, %v402
    %421 = vst.msk [vmem:[#allocation2 + $0x8] sm:$0xff] %vm322, %v407
    %422 = vst.msk [vmem:[#allocation2 + $0x10] sm:$0xff] %vm322, %v412
    %423 = vst.msk [vmem:[#allocation2 + $0x18] sm:$0xff] %vm322, %v417
    // Predicated region
    $region46: #{tpu_custom_call.1} parent=1 // pred_check
      _
    $region47: #{tpu_custom_call.1} parent=1 // pred_check_branch
      %425 = sbr.rel (0) target = $region49
    $region48: #{tpu_custom_call.1} parent=1 // pred_region
      %s427 = ssub.s32 512, 512
      %428 = vsyncadd [#allocation3], %s427
      %s429 = sshll.u32 [#allocation2], 4
      %s430 = int_to_ptr.vmem [resolvable:$true] %s429
      %435 = dma.vmem_to_hbm [thread:$0]  %s430, 512, %s11, [#allocation3], 128, 128, 8
    $region49: #{tpu_custom_call.1} parent=1 // pred_fallthru
      _
    // Predicated region
    $region50: #{tpu_custom_call.1} parent=1 // pred_check
      _
    $region51: #{tpu_custom_call.1} parent=1 // pred_check_branch
      %437 = sbr.rel (0) target = $region53
    $region52: #{tpu_custom_call.1} parent=1 // pred_region
      %438 = dma.done [#allocation3], 512
    $region53: #{tpu_custom_call.1} parent=1 // pred_fallthru
      _
    %439 = vsyncpa [#allocation3], 1

</llo_original>
